<compile_context>
chip_gen: v6e
topology: v6e:2x2x1
jax: 0.10.0
libtpu: 0.0.40
codegen_flags: <defaults>
</compile_context>

<pallas_src>
import jax
import jax.numpy as jnp
from jax import lax
from jax.experimental import pallas as pl
from jax.experimental.pallas import tpu as pltpu


def _round_up(x, m):
    return (x + m - 1) // m * m


def _largest_divisor_leq(n, cap, multiple):
    """Largest d with d | n, d <= cap, d % multiple == 0 (n % multiple == 0)."""
    best = multiple
    d = multiple
    top = min(n, cap)
    while d <= top:
        if n % d == 0:
            best = d
        d += multiple
    return best


def _pick_stats_feature_tile(k_pad):
    """Stats-pass feature tile: divides k_pad, <=512, and leaves >=2 feature
    tiles when possible so both v7x TensorCores get work on the parallel axis."""
    q = k_pad // 128
    if q == 1:
        return 128
    best = 1
    for d in range(1, q):          # d < q  =>  at least 2 feature tiles
        if q % d == 0 and 128 * d <= 512:
            best = d
    return 128 * best


def _vmem_capacity_bytes():
    try:
        info = pltpu.get_tpu_info()
        for attr in ("vmem_capacity_bytes", "vmem_bytes", "vmem_size_bytes"):
            v = getattr(info, attr, None)
            if v:
                return int(v)
    except Exception:
        pass
    return 64 * 1024 * 1024        # conservative fallback = v7x physical VMEM


# ----------------------------------------------------------------------------
# Pass 1: pivot-centered per-feature sum and sum-of-squares, streamed over B.
# grid = (K_pad // tk_s, B_pad // tm_s); batch axis is the (last) reduction axis.
# ----------------------------------------------------------------------------
def _stats_kernel(x_ref, pivot_ref, sum_ref, sq_ref, acc_s, acc_q):
    b = pl.program_id(1)

    @pl.when(b == 0)
    def _():
        acc_s[...] = jnp.zeros_like(acc_s)
        acc_q[...] = jnp.zeros_like(acc_q)

    # Pivot-centered values (robust variance).  Per-step reduce stays VPU-only:
    # fold (tm, tk) -> (tm//8, 8, tk) and add vreg groups into an (8, tk)
    # accumulator; the 8->1 cross-sublane (XLU) reduce runs once in the epilogue.
    xc = x_ref[...].astype(jnp.float32) - pivot_ref[...]
    rows, cols = xc.shape
    xg = xc.reshape(rows // 8, 8, cols)
    acc_s[...] += jnp.sum(xg, axis=0)
    acc_q[...] += jnp.sum(xg * xg, axis=0)

    @pl.when(b == pl.num_programs(1) - 1)
    def _():
        sum_ref[...] = jnp.sum(acc_s[...], axis=0, keepdims=True)
        sq_ref[...] = jnp.sum(acc_q[...], axis=0, keepdims=True)


# ----------------------------------------------------------------------------
# Pass 2a: K collapsed to one tile. grid = (B_pad//tm, N_pad//tn).
# ----------------------------------------------------------------------------
def _fused_single_k_kernel(x_ref, scale_ref, shift_ref, w_ref, bias_ref, o_ref):
    # BN folded into one per-feature fma, ReLU (VPU), MXU matmul w/ f32 accum;
    # bias fused into the single store.  No scratch, no k-loop.
    xn = jnp.maximum(
        x_ref[...].astype(jnp.float32) * scale_ref[...] + shift_ref[...], 0.0)
    acc = jnp.dot(xn.astype(w_ref.dtype), w_ref[...],
                  preferred_element_type=jnp.float32)
    o_ref[...] = (acc + bias_ref[...]).astype(o_ref.dtype)


# ----------------------------------------------------------------------------
# Pass 2b: multi-K-tile accumulation. grid = (B_pad//tm, N_pad//tn, K_pad//tk).
# ----------------------------------------------------------------------------
def _fused_multi_k_kernel(x_ref, scale_ref, shift_ref, w_ref, bias_ref, o_ref,
                          acc_ref):
    k = pl.program_id(2)

    @pl.when(k == 0)
    def _():
        acc_ref[...] = jnp.zeros_like(acc_ref)

    sc = scale_ref[k]              # (1, tk) slice of the VMEM-resident (nk,1,tk)
    sh = shift_ref[k]
    xn = jnp.maximum(x_ref[...].astype(jnp.float32) * sc + sh, 0.0)
    acc_ref[...] += jnp.dot(xn.astype(w_ref.dtype), w_ref[...],
                            preferred_element_type=jnp.float32)

    # Bias added exactly once, fused with the accumulator writeback.
    @pl.when(k == pl.num_programs(2) - 1)
    def _():
        o_ref[...] = (acc_ref[...] + bias_ref[...]).astype(o_ref.dtype)


def lin_bn_relu(x, gamma, beta, weight_t, bias, *, eps=1e-5,
                max_k_tile=1024, prefer_bf16_matmul=False):
    """x: (B, in_dim); weight_t: (in_dim, out_dim); bias: (out_dim,)."""
    B, in_dim = x.shape
    out_dim = weight_t.shape[1]
    f32 = jnp.float32

    x_bytes = jnp.dtype(x.dtype).itemsize
    o_bytes = x_bytes

    wp_src = weight_t
    if prefer_bf16_matmul and weight_t.dtype == jnp.float32:
        # v5e: f32 MXU passes are far slower than bf16; accumulation stays f32.
        wp_src = weight_t.astype(jnp.bfloat16)
    w_bytes = jnp.dtype(wp_src.dtype).itemsize

    vmem_cap = _vmem_capacity_bytes()
    budget = int(vmem_cap * 0.55)          # double-buffered working-set target

    # -------------------- pass-2 tile selection (VMEM-aware) --------------------
    if _round_up(in_dim, 128) <= max_k_tile:
        tk = _round_up(in_dim, 128)        # K collapsed: single reduction tile
        K_pad = tk
        multi_k = False
    else:
        tk = max(128, _round_up(max_k_tile, 128))
        K_pad = _round_up(in_dim, tk)
        multi_k = True

    row_align = 16 if x_bytes == 2 else 8  # bf16 sublane packing
    tm = min(512, _round_up(B, row_align))
    B_pad = _round_up(B, tm)

    n128 = _round_up(out_dim, 128)
    if n128 <= 2048:
        tn = n128                          # single N tile: x streamed exactly once
    else:
        tn = 512
    N_pad = _round_up(out_dim, tn)

    def p2_footprint(tm_, tn_, tk_):
        f = 2 * (tm_ * tk_ * x_bytes + tk_ * tn_ * w_bytes + tm_ * tn_ * o_bytes)
        f += 4 * K_pad * 4 + 2 * tn_ * 4   # resident scale/shift + bias tile
        if multi_k:
            f += tm_ * tn_ * 4             # f32 accumulator scratch
        return f

    while p2_footprint(tm, tn, tk) > budget:
        if tn > 128:
            tn = _round_up(tn // 2, 128)
            N_pad = _round_up(out_dim, tn)
        elif multi_k and tk > 128:
            tk = _round_up(tk // 2, 128)
            K_pad = _round_up(in_dim, tk)
        elif tm > row_align:
            tm = _round_up(tm // 2, row_align)
            B_pad = _round_up(B, tm)
        else:
            break

    # Guarantee >=2 tiles on a parallel axis when cheap (both v7x TensorCores).
    if (B_pad // tm) * (N_pad // tn) < 2:
        if tn >= 256 and tn % 256 == 0:
            tn //= 2
        elif tm >= 2 * row_align and tm % (2 * row_align) == 0:
            tm //= 2

    # -------------------- pass-1 tile selection --------------------
    tk_s = _pick_stats_feature_tile(K_pad)
    tm_s = _largest_divisor_leq(B_pad, 2048, row_align)   # big streaming tile

    # -------------------- padding (skipped when already aligned) ----------------
    kp = K_pad - in_dim
    np_ = N_pad - out_dim
    if B_pad != B or kp:
        xp = jnp.pad(x, ((0, B_pad - B), (0, kp)))
    else:
        xp = x
    gp = (jnp.pad(gamma.astype(f32), (0, kp)) if kp
          else gamma.astype(f32)).reshape(1, K_pad)
    bp = (jnp.pad(beta.astype(f32), (0, kp)) if kp
          else beta.astype(f32)).reshape(1, K_pad)
    wp = jnp.pad(wp_src, ((0, kp), (0, np_))) if (kp or np_) else wp_src
    biasp = (jnp.pad(bias, (0, np_)) if np_ else bias).astype(f32).reshape(1, N_pad)
    pivot = xp[:1].astype(f32)                       # (1, K_pad) centering pivot

    # -------------------- Pass 1: batch statistics --------------------
    p1_main = 2 * tm_s * tk_s * x_bytes
    vmem_p1 = int(min(max(3 * p1_main, 32 * 1024 * 1024), int(0.85 * vmem_cap)))

    sum_x, sum_sq = pl.pallas_call(
        _stats_kernel,
        out_shape=(jax.ShapeDtypeStruct((1, K_pad), f32),
                   jax.ShapeDtypeStruct((1, K_pad), f32)),
        grid_spec=pltpu.PrefetchScalarGridSpec(
            num_scalar_prefetch=0,
            grid=(K_pad // tk_s, B_pad // tm_s),
            in_specs=[
                pl.BlockSpec((tm_s, tk_s), lambda j, b: (b, j)),
                pl.BlockSpec((1, tk_s), lambda j, b: (0, j)),
            ],
            out_specs=(
                pl.BlockSpec((1, tk_s), lambda j, b: (0, j)),
                pl.BlockSpec((1, tk_s), lambda j, b: (0, j)),
            ),
            scratch_shapes=[pltpu.VMEM((8, tk_s), f32),
                            pltpu.VMEM((8, tk_s), f32)],
        ),
        compiler_params=pltpu.CompilerParams(
            dimension_semantics=("parallel", "arbitrary"),
            vmem_limit_bytes=vmem_p1),
    )(xp, pivot)

    # XLA glue: remove padded-row contributions (exact), then fold BN to a fma.
    n_pad_rows = float(B_pad - B)
    s1 = sum_x + n_pad_rows * pivot            # padded rows added (0 - pivot)
    s2 = sum_sq - n_pad_rows * pivot * pivot   # padded rows added pivot^2
    inv_b = 1.0 / B
    mean_c = s1 * inv_b                        # E[x - pivot]
    var = jnp.maximum(s2 * inv_b - mean_c * mean_c, 0.0)
    inv_std = lax.rsqrt(var + eps)
    scale = gp * inv_std                       # 0 on padded features (gamma pad 0)
    shift = bp - (pivot + mean_c) * scale

    # -------------------- Pass 2: normalize -> ReLU -> matmul --------------------
    vmem_p2 = int(min(max(2 * p2_footprint(tm, tn, tk), 32 * 1024 * 1024),
                      int(0.85 * vmem_cap)))
    x_reads = (N_pad // tn) if multi_k else 1
    w_reads = B_pad // tm
    cost = pl.CostEstimate(
        flops=2 * B_pad * K_pad * N_pad,
        transcendentals=0,
        bytes_accessed=int(x_reads * B_pad * K_pad * x_bytes
                           + w_reads * K_pad * N_pad * w_bytes
                           + B_pad * N_pad * o_bytes
                           + 3 * K_pad * 4 + N_pad * 4),
    )
    grid_ij = (B_pad // tm, N_pad // tn)

    if not multi_k:
        out_pad = pl.pallas_call(
            _fused_single_k_kernel,
            out_shape=jax.ShapeDtypeStruct((B_pad, N_pad), x.dtype),
            grid_spec=pltpu.PrefetchScalarGridSpec(
                num_scalar_prefetch=0,
                grid=grid_ij,
                in_specs=[
                    pl.BlockSpec((tm, K_pad), lambda i, j: (i, 0)),   # x
                    pl.BlockSpec((1, K_pad), lambda i, j: (0, 0)),    # scale (resident)
                    pl.BlockSpec((1, K_pad), lambda i, j: (0, 0)),    # shift (resident)
                    pl.BlockSpec((K_pad, tn), lambda i, j: (0, j)),   # W (in,out)
                    pl.BlockSpec((1, tn), lambda i, j: (0, j)),       # bias
                ],
                out_specs=pl.BlockSpec((tm, tn), lambda i, j: (i, j)),
            ),
            compiler_params=pltpu.CompilerParams(
                dimension_semantics=("parallel", "parallel"),
                vmem_limit_bytes=vmem_p2),
            cost_estimate=cost,
        )(xp, scale, shift, wp, biasp)
    else:
        nk = K_pad // tk
        scale3 = scale.reshape(nk, 1, tk)
        shift3 = shift.reshape(nk, 1, tk)
        out_pad = pl.pallas_call(
            _fused_multi_k_kernel,
            out_shape=jax.ShapeDtypeStruct((B_pad, N_pad), x.dtype),
            grid_spec=pltpu.PrefetchScalarGridSpec(
                num_scalar_prefetch=0,
                grid=grid_ij + (nk,),
                in_specs=[
                    pl.BlockSpec((tm, tk), lambda i, j, k: (i, k)),        # x
                    pl.BlockSpec((nk, 1, tk), lambda i, j, k: (0, 0, 0)),  # scale
                    pl.BlockSpec((nk, 1, tk), lambda i, j, k: (0, 0, 0)),  # shift
                    pl.BlockSpec((tk, tn), lambda i, j, k: (k, j)),        # W
                    pl.BlockSpec((1, tn), lambda i, j, k: (0, j)),         # bias
                ],
                out_specs=pl.BlockSpec((tm, tn), lambda i, j, k: (i, j)),
                scratch_shapes=[pltpu.VMEM((tm, tn), f32)],
            ),
            compiler_params=pltpu.CompilerParams(
                dimension_semantics=("parallel", "parallel", "arbitrary"),
                vmem_limit_bytes=vmem_p2),
            cost_estimate=cost,
        )(xp, scale3, shift3, wp, biasp)

    if B_pad != B or N_pad != out_dim:
        out_pad = out_pad[:B, :out_dim]
    return out_pad


def reference(x, gamma, beta, weight_t, bias, eps=1e-5):
    x32 = x.astype(jnp.float32)
    mean = jnp.mean(x32, axis=0, keepdims=True)
    var = jnp.mean((x32 - mean) ** 2, axis=0, keepdims=True)
    xn = (x32 - mean) / jnp.sqrt(var + eps) * gamma + beta
    xn = jnp.maximum(xn, 0.0)
    return (xn @ weight_t.astype(jnp.float32) + bias).astype(x.dtype)


if __name__ == "__main__":
    def make_case(key, B, in_dim, out_dim):
        kx, kw, kb, kg, kbt = jax.random.split(key, 5)
        # Shifted/scaled inputs exercise the |mean| >> std regime for BN stats.
        x = 3.0 + 2.0 * jax.random.normal(kx, (B, in_dim), dtype=jnp.float32)
        gamma = 1.0 + 0.1 * jax.random.normal(kg, (in_dim,), dtype=jnp.float32)
        beta = 0.1 * jax.random.normal(kbt, (in_dim,), dtype=jnp.float32)
        bound = 1.0 / (in_dim ** 0.5)
        weight = jax.random.uniform(kw, (out_dim, in_dim), jnp.float32, -bound, bound)
        bias = jax.random.uniform(kb, (out_dim,), jnp.float32, -bound, bound)
        return x, gamma, beta, weight.T, bias

    k1, k2 = jax.random.split(jax.random.PRNGKey(0), 2)

    # Case 1: module-sized small shapes -> collapsed-K fast path (+ batch pad).
    x, g, b_, wt, bi = make_case(k1, 6, 32, 16)
    out = jax.block_until_ready(lin_bn_relu(x, g, b_, wt, bi))
    ref = reference(x, g, b_, wt, bi)
    assert out.shape == (6, 16)
    assert jnp.allclose(out, ref, atol=2e-4, rtol=2e-4), "case 1 mismatch"

    # Case 2: forces the multi-K accumulator path and a multi-tile stats grid.
    x, g, b_, wt, bi = make_case(k2, 16, 256, 64)
    out = jax.block_until_ready(lin_bn_relu(x, g, b_, wt, bi, max_k_tile=128))
    ref = reference(x, g, b_, wt, bi)
    assert out.shape == (16, 64)
    assert jnp.allclose(out, ref, atol=2e-4, rtol=2e-4), "case 2 mismatch"

    print("KERNEL_OK")
</pallas_src>

<mosaic_0001>
module attributes {stable_mosaic.version = 11 : i64} {
  func.func @_stats_kernel(%arg0: i32, %arg1: i32, %arg2: memref<8x128xf32, #tpu.memory_space<vmem>>, %arg3: memref<1x128xf32, #tpu.memory_space<vmem>>, %arg4: memref<1x128xf32, #tpu.memory_space<vmem>>, %arg5: memref<1x128xf32, #tpu.memory_space<vmem>>, %arg6: memref<8x128xf32, #tpu.memory_space<vmem>>, %arg7: memref<8x128xf32, #tpu.memory_space<vmem>>) attributes {dimension_semantics = [#tpu.dimension_semantics<parallel>, #tpu.dimension_semantics<arbitrary>], iteration_bounds = array<i64: 1, 1>, scalar_prefetch = 0 : i64, scratch_operands = 2 : i64, tpu.core_type = #tpu.core_type<tc>, window_params = [{transform_indices = @transform_0, window_bounds = array<i64: 8, 128>}, {transform_indices = @transform_1, window_bounds = array<i64: 1, 128>}, {transform_indices = @transform_2, window_bounds = array<i64: 1, 128>}, {transform_indices = @transform_3, window_bounds = array<i64: 1, 128>}]} {
    %c0_i32 = arith.constant 0 : i32
    %0 = arith.cmpi eq, %arg1, %c0_i32 : i32
    %1 = arith.extui %0 : i1 to i32
    %c0_i32_0 = arith.constant 0 : i32
    %2 = arith.cmpi ne, %1, %c0_i32_0 : i32
    scf.if %2 {
      %cst_15 = arith.constant 0.000000e+00 : f32
      %20 = vector.broadcast %cst_15 : f32 to vector<8x128xf32>
      %c0_16 = arith.constant 0 : index
      %c0_17 = arith.constant 0 : index
      %21 = vector.load %arg6[%c0_16, %c0_17] : memref<8x128xf32, #tpu.memory_space<vmem>>, vector<8x128xf32>
      tpu.vector_store %arg6[%c0_16, %c0_17], %20 {strides = array<i32>} : memref<8x128xf32, #tpu.memory_space<vmem>>, vector<8x128xf32>,
      %cst_18 = arith.constant 0.000000e+00 : f32
      %22 = vector.broadcast %cst_18 : f32 to vector<8x128xf32>
      %c0_19 = arith.constant 0 : index
      %c0_20 = arith.constant 0 : index
      %23 = vector.load %arg7[%c0_19, %c0_20] : memref<8x128xf32, #tpu.memory_space<vmem>>, vector<8x128xf32>
      tpu.vector_store %arg7[%c0_19, %c0_20], %22 {strides = array<i32>} : memref<8x128xf32, #tpu.memory_space<vmem>>, vector<8x128xf32>,
    } else {
    }
    %c0 = arith.constant 0 : index
    %c0_1 = arith.constant 0 : index
    %3 = vector.load %arg2[%c0, %c0_1] : memref<8x128xf32, #tpu.memory_space<vmem>>, vector<8x128xf32>
    %c0_2 = arith.constant 0 : index
    %c0_3 = arith.constant 0 : index
    %4 = vector.load %arg3[%c0_2, %c0_3] : memref<1x128xf32, #tpu.memory_space<vmem>>, vector<1x128xf32>
    %5 = vector.broadcast %4 : vector<1x128xf32> to vector<8x128xf32>
    %6 = arith.subf %3, %5 : vector<8x128xf32>
    %7 = vector.shape_cast %6 : vector<8x128xf32> to vector<1x8x128xf32>
    %c0_4 = arith.constant 0 : index
    %c0_5 = arith.constant 0 : index
    %8 = vector.load %arg6[%c0_4, %c0_5] : memref<8x128xf32, #tpu.memory_space<vmem>>, vector<8x128xf32>
    %cst = arith.constant dense<0.000000e+00> : vector<8x128xf32>
    %9 = vector.multi_reduction <add>, %7, %cst [0] : vector<1x8x128xf32> to vector<8x128xf32>
    %10 = arith.addf %8, %9 : vector<8x128xf32>
    %c0_6 = arith.constant 0 : index
    %c0_7 = arith.constant 0 : index
    %11 = vector.load %arg6[%c0_6, %c0_7] : memref<8x128xf32, #tpu.memory_space<vmem>>, vector<8x128xf32>
    tpu.vector_store %arg6[%c0_6, %c0_7], %10 {strides = array<i32>} : memref<8x128xf32, #tpu.memory_space<vmem>>, vector<8x128xf32>,
    %c0_8 = arith.constant 0 : index
    %c0_9 = arith.constant 0 : index
    %12 = vector.load %arg7[%c0_8, %c0_9] : memref<8x128xf32, #tpu.memory_space<vmem>>, vector<8x128xf32>
    %13 = arith.mulf %7, %7 : vector<1x8x128xf32>
    %cst_10 = arith.constant dense<0.000000e+00> : vector<8x128xf32>
    %14 = vector.multi_reduction <add>, %13, %cst_10 [0] : vector<1x8x128xf32> to vector<8x128xf32>
    %15 = arith.addf %12, %14 : vector<8x128xf32>
    %c0_11 = arith.constant 0 : index
    %c0_12 = arith.constant 0 : index
    %16 = vector.load %arg7[%c0_11, %c0_12] : memref<8x128xf32, #tpu.memory_space<vmem>>, vector<8x128xf32>
    tpu.vector_store %arg7[%c0_11, %c0_12], %15 {strides = array<i32>} : memref<8x128xf32, #tpu.memory_space<vmem>>, vector<8x128xf32>,
    %c0_i32_13 = arith.constant 0 : i32
    %17 = arith.cmpi eq, %arg1, %c0_i32_13 : i32
    %18 = arith.extui %17 : i1 to i32
    %c0_i32_14 = arith.constant 0 : i32
    %19 = arith.cmpi ne, %18, %c0_i32_14 : i32
    scf.if %19 {
      %c0_15 = arith.constant 0 : index
      %c0_16 = arith.constant 0 : index
      %20 = vector.load %arg6[%c0_15, %c0_16] : memref<8x128xf32, #tpu.memory_space<vmem>>, vector<8x128xf32>
      %cst_17 = arith.constant dense<0.000000e+00> : vector<128xf32>
      %21 = vector.multi_reduction <add>, %20, %cst_17 [0] : vector<8x128xf32> to vector<128xf32>
      %22 = vector.shape_cast %21 : vector<128xf32> to vector<1x128xf32>
      %c0_18 = arith.constant 0 : index
      %c0_19 = arith.constant 0 : index
      %23 = vector.load %arg4[%c0_18, %c0_19] : memref<1x128xf32, #tpu.memory_space<vmem>>, vector<1x128xf32>
      tpu.vector_store %arg4[%c0_18, %c0_19], %22 {strides = array<i32>} : memref<1x128xf32, #tpu.memory_space<vmem>>, vector<1x128xf32>,
      %c0_20 = arith.constant 0 : index
      %c0_21 = arith.constant 0 : index
      %24 = vector.load %arg7[%c0_20, %c0_21] : memref<8x128xf32, #tpu.memory_space<vmem>>, vector<8x128xf32>
      %cst_22 = arith.constant dense<0.000000e+00> : vector<128xf32>
      %25 = vector.multi_reduction <add>, %24, %cst_22 [0] : vector<8x128xf32> to vector<128xf32>
      %26 = vector.shape_cast %25 : vector<128xf32> to vector<1x128xf32>
      %c0_23 = arith.constant 0 : index
      %c0_24 = arith.constant 0 : index
      %27 = vector.load %arg5[%c0_23, %c0_24] : memref<1x128xf32, #tpu.memory_space<vmem>>, vector<1x128xf32>
      tpu.vector_store %arg5[%c0_23, %c0_24], %26 {strides = array<i32>} : memref<1x128xf32, #tpu.memory_space<vmem>>, vector<1x128xf32>,
    } else {
    }
    return
  }
  func.func @transform_0(%arg0: i32, %arg1: i32) -> (i32, i32) {
    %c0_i32 = arith.constant 0 : i32
    return %arg1, %arg0 : i32, i32
  }
  func.func @transform_1(%arg0: i32, %arg1: i32) -> (i32, i32) {
    %c0_i32 = arith.constant 0 : i32
    %c0_i32_0 = arith.constant 0 : i32
    return %c0_i32, %arg0 : i32, i32
  }
  func.func @transform_2(%arg0: i32, %arg1: i32) -> (i32, i32) {
    %c0_i32 = arith.constant 0 : i32
    %c0_i32_0 = arith.constant 0 : i32
    return %c0_i32, %arg0 : i32, i32
  }
  func.func @transform_3(%arg0: i32, %arg1: i32) -> (i32, i32) {
    %c0_i32 = arith.constant 0 : i32
    %c0_i32_0 = arith.constant 0 : i32
    return %c0_i32, %arg0 : i32, i32
  }
}

</mosaic_0001>

<llo_original>
// kernel: tpu_custom_call.1
$region0: #{tpu_custom_call.1}
  #allocation0 [shape = 'u32[]', space=smem, size = 0x4, offset = 0x4, fixed_abs, tag = 'smem constant byte address 0x4 - core index']
  #allocation1 [shape = 'u32[144,128]{1,0:T(1,128)}', space=vmem, size = 0x12000, scoped, tag = 'internal scratch']
  #allocation2 [shape = 'f32[8,128]{1,0:T(8,128)}', space=vmem, size = 0x1000, scoped, tag = 'scratch operand']
  #allocation3 [shape = 'f32[8,128]{1,0:T(8,128)}', space=vmem, size = 0x1000, scoped, tag = 'scratch operand']
  %s0 = inlined_call_operand.hbm [shape: f32[8,128], index: 0, kind: input, shape index: {}]
  %s1 = inlined_call_operand.vmem [shape: f32[1,128], index: 1, kind: input, shape index: {}]
  %s2 = inlined_call_operand.hbm [shape: f32[1,128], index: 2, kind: output, shape index: {0}]
  %s3 = inlined_call_operand.hbm [shape: f32[1,128], index: 3, kind: output, shape index: {1}]
  %4 = xla_tuple %s2, %s3
  %s5 = sld [smem:[#allocation0]]
  $region38: #{tpu_custom_call.1} parent=0
    _
  %s7 = ssub.s32 1, %s5
  %s8 = scalar_select 0, %s7, %s5
  $region1: #{tpu_custom_call.1} parent=0
    #allocation4 [shape = 'u8[4096]{0}', space=vmem, size = 0x1000, scoped, tag = 'input window, operand 0, single buffered']
    #allocation5 [shape = 's32[1]{0}', space=sflag, size = 0x4, scoped, tag = 'scoped memory for tpu_custom_call.1']
    #allocation6 [shape = 's32[1]{0}', space=sflag, size = 0x4, scoped, tag = 'scoped memory for tpu_custom_call.1']
    #allocation7 [shape = 'u8[512]{0}', space=vmem, size = 0x400, scoped, tag = 'output window, operand 0, single buffered']
    #allocation8 [shape = 'u8[512]{0}', space=vmem, size = 0x400, scoped, tag = 'output window, operand 1, single buffered']
    #allocation9 [shape = 's32[1]{0}', space=sflag, size = 0x4, scoped, tag = 'scoped memory for tpu_custom_call.1']
    %9 = vsyncpa [#allocation5], 0
    %10 = vsyncpa [#allocation6], 0
    %11 = vsyncpa [#allocation9], 0
    // Predicated region
    $region2: #{tpu_custom_call.1} parent=1 // pred_check
      _
    $region3: #{tpu_custom_call.1} parent=1 // pred_check_branch
      %13 = sbr.rel (0) target = $region5
    $region4: #{tpu_custom_call.1} parent=1 // pred_region
      %s15 = ssub.s32 128, 128
      %16 = vsyncadd [#allocation5], %s15
      %s18 = sshll.u32 [#allocation4], 4
      %s19 = int_to_ptr.vmem [resolvable:$true] %s18
      %21 = dma.hbm_to_vmem [thread:$0]  %s0, 128, %s19, [#allocation5]
    $region5: #{tpu_custom_call.1} parent=1 // pred_fallthru
      _
    // Predicated region
    $region6: #{tpu_custom_call.1} parent=1 // pred_check
      _
    $region7: #{tpu_custom_call.1} parent=1 // pred_check_branch
      %23 = sbr.rel (0) target = $region9
    $region8: #{tpu_custom_call.1} parent=1 // pred_region
      _
    $region9: #{tpu_custom_call.1} parent=1 // pred_fallthru
      _
    // Predicated region
    $region10: #{tpu_custom_call.1} parent=1 // pred_check
      _
    $region11: #{tpu_custom_call.1} parent=1 // pred_check_branch
      %25 = sbr.rel (0) target = $region13
    $region12: #{tpu_custom_call.1} parent=1 // pred_region
      %26 = dma.done [#allocation5], 128
    $region13: #{tpu_custom_call.1} parent=1 // pred_fallthru
      _
    %p27 = scmp.eq.s32.totalorder 0, 0
    // Predicated region
    $region14: #{tpu_custom_call.1} parent=1 // pred_check
      %p28 = pneg %p27
    $region15: #{tpu_custom_call.1} parent=1 // pred_check_branch
      %30 = sbr.rel (%p28) target = $region17
    $region16: #{tpu_custom_call.1} parent=1 // pred_region
      %31 = vst [vmem:[#allocation2] sm:$0xff] 0.0
      %32 = vst [vmem:[#allocation3] sm:$0xff] 0.0
    $region17: #{tpu_custom_call.1} parent=1 // pred_fallthru
      _
    %v33 = vld [vmem:[#allocation4] sm:$0xff]
    %v34 = vld [vmem:[%s1] sm:$0x1]
    %v36 = vlaneseq
    %v37 = vshrl.u32 %v36, 7
    %v38 = vsub.s32 0, %v37
    %v39 = vrot.slane %v34, %v38
    %v41 = vsub.f32 %v33, %v39
    %v42 = vld [vmem:[#allocation2] sm:$0xff]
    %v43 = vadd.f32 %v41, 0.0
    %v44 = vadd.f32 %v42, %v43
    %45 = vst [vmem:[#allocation2] sm:$0xff] %v44
    %v46 = vld [vmem:[#allocation3] sm:$0xff]
    %v47 = vmul.f32 %v41, %v41
    %v48 = vadd.f32 %v47, 0.0
    %v49 = vadd.f32 %v46, %v48
    %50 = vst [vmem:[#allocation3] sm:$0xff] %v49
    // Predicated region
    $region18: #{tpu_custom_call.1} parent=1 // pred_check
      %p51 = pneg %p27
    $region19: #{tpu_custom_call.1} parent=1 // pred_check_branch
      %53 = sbr.rel (%p51) target = $region21
    $region20: #{tpu_custom_call.1} parent=1 // pred_region
      %v54 = vld [vmem:[#allocation2] sm:$0xff]
      %v55 = vrot.slane %v54, 4
      %v56 = vadd.f32 %v54, %v55
      %v57 = vrot.slane %v56, 2
      %v58 = vadd.f32 %v56, %v57
      %v59 = vrot.slane %v58, 1
      %v60 = vadd.f32 %v58, %v59
      %61 = vst [vmem:[#allocation7] sm:$0x1] %v60
      %v62 = vld [vmem:[#allocation3] sm:$0xff]
      %v63 = vrot.slane %v62, 4
      %v64 = vadd.f32 %v62, %v63
      %v65 = vrot.slane %v64, 2
      %v66 = vadd.f32 %v64, %v65
      %v67 = vrot.slane %v66, 1
      %v68 = vadd.f32 %v66, %v67
      %69 = vst [vmem:[#allocation8] sm:$0x1] %v68
    $region21: #{tpu_custom_call.1} parent=1 // pred_fallthru
      _
    // Predicated region
    $region22: #{tpu_custom_call.1} parent=1 // pred_check
      _
    $region23: #{tpu_custom_call.1} parent=1 // pred_check_branch
      %71 = sbr.rel (0) target = $region25
    $region24: #{tpu_custom_call.1} parent=1 // pred_region
      %s73 = ssub.s32 16, 16
      %74 = vsyncadd [#allocation6], %s73
      %s76 = sshll.u32 [#allocation7], 4
      %s77 = int_to_ptr.vmem [resolvable:$true] %s76
      %79 = dma.vmem_to_hbm [thread:$0]  %s77, 16, %s2, [#allocation6]
    $region25: #{tpu_custom_call.1} parent=1 // pred_fallthru
      _
    // Predicated region
    $region26: #{tpu_custom_call.1} parent=1 // pred_check
      _
    $region27: #{tpu_custom_call.1} parent=1 // pred_check_branch
      %81 = sbr.rel (0) target = $region29
    $region28: #{tpu_custom_call.1} parent=1 // pred_region
      %s83 = ssub.s32 16, 16
      %84 = vsyncadd [#allocation9], %s83
      %s86 = sshll.u32 [#allocation8], 4
      %s87 = int_to_ptr.vmem [resolvable:$true] %s86
      %89 = dma.vmem_to_hbm [thread:$0]  %s87, 16, %s3, [#allocation9]
    $region29: #{tpu_custom_call.1} parent=1 // pred_fallthru
      _
    // Predicated region
    $region30: #{tpu_custom_call.1} parent=1 // pred_check
      _
    $region31: #{tpu_custom_call.1} parent=1 // pred_check_branch
      %91 = sbr.rel (0) target = $region33
    $region32: #{tpu_custom_call.1} parent=1 // pred_region
      %92 = dma.done [#allocation6], 16
    $region33: #{tpu_custom_call.1} parent=1 // pred_fallthru
      _
    // Predicated region
    $region34: #{tpu_custom_call.1} parent=1 // pred_check
      _
    $region35: #{tpu_custom_call.1} parent=1 // pred_check_branch
      %94 = sbr.rel (0) target = $region37
    $region36: #{tpu_custom_call.1} parent=1 // pred_region
      %95 = dma.done [#allocation9], 16
    $region37: #{tpu_custom_call.1} parent=1 // pred_fallthru
      _
    %96 = vsyncpa [#allocation5], 1
    %97 = vsyncpa [#allocation6], 1
    %98 = vsyncpa [#allocation9], 1

</llo_original>
